<compile_context>
chip_gen: v7x
topology: tpu7x:2x2x1
jax: 0.10.0
libtpu: 0.0.40
codegen_flags: <defaults>
</compile_context>

<pallas_src>
import jax
import jax.numpy as jnp
from jax.experimental import pallas as pl
from jax.experimental.pallas import tpu as pltpu


def _kp_kernel(z_ref, w_ref, rec_ref, pred_ref):
    # z_ref:   (TB, L*E)            lane-dense input slab
    # w_ref:   (L*E, L*E + Ppad*E)  fused [rec | pred] weight, VMEM-resident
    # rec_ref: (TB, L*E)            reconstruction slab
    # pred_ref:(TB, Ppad*E)         prediction slab (lane-dense, padded cols)
    rec_cols = rec_ref.shape[-1]
    full = jnp.dot(z_ref[...], w_ref[...], preferred_element_type=jnp.float32)
    rec_ref[...] = full[:, :rec_cols].astype(rec_ref.dtype)
    pred_ref[...] = full[:, rec_cols:].astype(pred_ref.dtype)


def _round_up(x, m):
    return ((x + m - 1) // m) * m


def kp_layer_forward(z, K_dynamic, pred_len=1, block_batch=None,
                     vmem_budget_bytes=24 << 20):
    """Pallas implementation of KPLayer.forward (mode='dynamic')."""
    assert pred_len >= 1, "prediction length should not be less than 1"
    B, L, E = z.shape
    assert L > 1, "snapshots number should be larger than 1"

    LE = L * E
    PE = pred_len * E
    pred_cols = _round_up(PE, 128)          # lane-dense prediction slab width
    dtype = z.dtype

    # NaN guard from the reference: replace K by identity if any NaN
    # (applied before building the powers so identity propagates).
    K = jnp.where(jnp.any(jnp.isnan(K_dynamic)),
                  jnp.eye(E, dtype=K_dynamic.dtype),
                  K_dynamic)

    # K, K^2, ..., K^pred_len (tiny XLA ops, done once).
    powers = [K]
    for _ in range(1, pred_len):
        powers.append(powers[-1] @ K)

    # Fused weight  W = [ W_rec | W_pred ]  (LE, LE + pred_cols):
    #   rec block j=0   : identity (copy first snapshot)
    #   rec block j=i+1 : K placed at rows i*E..(i+1)*E  ->  z[:, i] @ K
    #   pred block j    : K^(j+1) placed at the last E rows -> z[:, -1] @ K^(j+1)
    W = jnp.zeros((LE, LE + pred_cols), dtype=dtype)
    W = W.at[0:E, 0:E].set(jnp.eye(E, dtype=dtype))
    for i in range(L - 1):
        W = W.at[i * E:(i + 1) * E, (i + 1) * E:(i + 2) * E].set(K.astype(dtype))
    for j in range(pred_len):
        W = W.at[(L - 1) * E:L * E, LE + j * E:LE + (j + 1) * E].set(
            powers[j].astype(dtype))

    # --- batch tile from a VMEM budget ----------------------------------
    itemsize = jnp.dtype(dtype).itemsize
    if block_batch is None:
        # per batch element: double-buffered in/rec/pred blocks + f32 matmul
        # intermediate (counted x2 as headroom).
        per_elem = (2 * LE + 2 * LE + 2 * pred_cols) * itemsize \
                   + 2 * (LE + pred_cols) * 4
        budget = vmem_budget_bytes - 2 * LE * (LE + pred_cols) * itemsize
        tb = max(8, budget // per_elem)
        tb = min(tb, 4096)
        if B > 16:
            # keep >= 2 grid blocks so v7x's two TensorCores both get work.
            half = _round_up(-(-B // 2), 8)
            tb = min(tb, half)
        tb = max(8, (tb // 8) * 8)
        if B <= tb:
            tb = B
    else:
        tb = block_batch

    num_blocks = pl.cdiv(B, tb)
    B_pad = num_blocks * tb

    z_slab = z.reshape(B, LE)               # free reshape, HBM layout unchanged
    if B_pad != B:
        z_slab = jnp.pad(z_slab, ((0, B_pad - B), (0, 0)))

    rec_slab, pred_slab = pl.pallas_call(
        _kp_kernel,
        out_shape=(jax.ShapeDtypeStruct((B_pad, LE), dtype),
                   jax.ShapeDtypeStruct((B_pad, pred_cols), dtype)),
        grid=(num_blocks,),
        in_specs=[
            pl.BlockSpec((tb, LE), lambda b: (b, 0)),
            pl.BlockSpec((LE, LE + pred_cols), lambda b: (0, 0)),  # resident
        ],
        out_specs=(
            pl.BlockSpec((tb, LE), lambda b: (b, 0)),
            pl.BlockSpec((tb, pred_cols), lambda b: (b, 0)),
        ),
        compiler_params=pltpu.CompilerParams(
            dimension_semantics=("parallel",),
            vmem_limit_bytes=32 << 20),
    )(z_slab, W)

    z_rec = rec_slab[:B].reshape(B, L, E)
    z_preds = pred_slab[:B, :PE].reshape(B, pred_len, E)
    return z_rec, z_preds


def _reference_forward(z, K, pred_len):
    """Plain-JAX reference (mirrors the PyTorch code) for a sanity check."""
    B, L, E = z.shape
    x = z[:, :-1]
    Kb = jnp.broadcast_to(K, (B, E, E))
    z_pred = jnp.einsum("ble,bef->blf", z[:, -1:], Kb)
    z_rec = jnp.concatenate([z[:, :1], jnp.einsum("ble,bef->blf", x, Kb)], axis=1)
    preds = [z_pred]
    for _ in range(1, pred_len):
        z_pred = jnp.einsum("ble,bef->blf", z_pred, Kb)
        preds.append(z_pred)
    return z_rec, jnp.concatenate(preds, axis=1)


if __name__ == "__main__":
    key = jax.random.PRNGKey(0)
    k_z, k_K, k_z2, k_z3 = jax.random.split(key, 4)

    L, E = 8, 32              # input_len, dynamic_dim
    pred_len = 4

    # Deterministic parameter init mirroring the PyTorch __init__:
    # K_init ~ N(0,1); U, _, V = svd(K_init); K_dynamic = U @ V^T (orthogonal).
    K_init = jax.random.normal(k_K, (E, E), dtype=jnp.float32)
    U, _, Vh = jnp.linalg.svd(K_init)
    K_dynamic = (U @ Vh).astype(jnp.float32)

    # Case 1: small batch, single grid step.
    B = 2
    z = jax.random.normal(k_z, (B, L, E), dtype=jnp.float32)
    z_rec, z_preds = kp_layer_forward(z, K_dynamic, pred_len=pred_len)
    jax.block_until_ready((z_rec, z_preds))
    ref_rec, ref_preds = _reference_forward(z, K_dynamic, pred_len)
    assert z_rec.shape == (B, L, E)
    assert z_preds.shape == (B, pred_len, E)
    assert jnp.allclose(z_rec, ref_rec, atol=1e-4, rtol=1e-4)
    assert jnp.allclose(z_preds, ref_preds, atol=1e-4, rtol=1e-4)

    # Case 2: batch needing padding + a multi-step grid (exercises tiling path).
    B2 = 11
    z2 = jax.random.normal(k_z2, (B2, L, E), dtype=jnp.float32)
    z_rec2, z_preds2 = kp_layer_forward(z2, K_dynamic, pred_len=pred_len,
                                        block_batch=8)
    jax.block_until_ready((z_rec2, z_preds2))
    ref_rec2, ref_preds2 = _reference_forward(z2, K_dynamic, pred_len)
    assert z_rec2.shape == (B2, L, E)
    assert z_preds2.shape == (B2, pred_len, E)
    assert jnp.allclose(z_rec2, ref_rec2, atol=1e-4, rtol=1e-4)
    assert jnp.allclose(z_preds2, ref_preds2, atol=1e-4, rtol=1e-4)

    # Case 3: pred_len=1 exercises the prediction-column padding (P*E=32 -> 128).
    B3 = 4
    z3 = jax.random.normal(k_z3, (B3, L, E), dtype=jnp.float32)
    z_rec3, z_preds3 = kp_layer_forward(z3, K_dynamic, pred_len=1)
    jax.block_until_ready((z_rec3, z_preds3))
    ref_rec3, ref_preds3 = _reference_forward(z3, K_dynamic, 1)
    assert z_preds3.shape == (B3, 1, E)
    assert jnp.allclose(z_rec3, ref_rec3, atol=1e-4, rtol=1e-4)
    assert jnp.allclose(z_preds3, ref_preds3, atol=1e-4, rtol=1e-4)

    # Case 4: NaN guard -> K replaced by identity.
    K_nan = K_dynamic.at[0, 0].set(jnp.nan)
    z_rec4, z_preds4 = kp_layer_forward(z, K_nan, pred_len=pred_len)
    jax.block_until_ready((z_rec4, z_preds4))
    ref_rec4, ref_preds4 = _reference_forward(z, jnp.eye(E, dtype=jnp.float32),
                                              pred_len)
    assert jnp.allclose(z_rec4, ref_rec4, atol=1e-4, rtol=1e-4)
    assert jnp.allclose(z_preds4, ref_preds4, atol=1e-4, rtol=1e-4)

    print("KERNEL_OK")
</pallas_src>

<mosaic_0001>
module attributes {stable_mosaic.version = 11 : i64} {
  func.func @_kp_kernel(%arg0: i32, %arg1: memref<2x256xf32, #tpu.memory_space<vmem>>, %arg2: memref<256x384xf32, #tpu.memory_space<vmem>>, %arg3: memref<2x256xf32, #tpu.memory_space<vmem>>, %arg4: memref<2x128xf32, #tpu.memory_space<vmem>>) attributes {dimension_semantics = [#tpu.dimension_semantics<parallel>], iteration_bounds = array<i64: 1>, scalar_prefetch = 0 : i64, scratch_operands = 0 : i64, tpu.core_type = #tpu.core_type<tc>, window_params = [{transform_indices = @transform_0, window_bounds = array<i64: 2, 256>}, {pipeline_mode = #tpu.pipeline_mode<synchronous>, transform_indices = @transform_1, window_bounds = array<i64: 256, 384>}, {transform_indices = @transform_2, window_bounds = array<i64: 2, 256>}, {transform_indices = @transform_3, window_bounds = array<i64: 2, 128>}]} {
    %c0 = arith.constant 0 : index
    %c0_0 = arith.constant 0 : index
    %0 = vector.load %arg1[%c0, %c0_0] : memref<2x256xf32, #tpu.memory_space<vmem>>, vector<2x256xf32>
    %c0_1 = arith.constant 0 : index
    %c0_2 = arith.constant 0 : index
    %1 = vector.load %arg2[%c0_1, %c0_2] : memref<256x384xf32, #tpu.memory_space<vmem>>, vector<256x384xf32>
    %cst = arith.constant dense<0.000000e+00> : vector<2x384xf32>
    %2 = tpu.matmul %0, %1, %cst {dimension_numbers = #tpu.dot_dimension_numbers<[1], [0], [0], [1], [0, 0, 1, 1], [], []>} : vector<2x256xf32>, vector<256x384xf32>, vector<2x384xf32> -> vector<2x384xf32>
    %3 = vector.extract_strided_slice %2 {offsets = [0, 0], sizes = [2, 256], strides = [1, 1]} : vector<2x384xf32> to vector<2x256xf32>
    %c0_3 = arith.constant 0 : index
    %c0_4 = arith.constant 0 : index
    %4 = vector.load %arg3[%c0_3, %c0_4] : memref<2x256xf32, #tpu.memory_space<vmem>>, vector<2x256xf32>
    tpu.vector_store %arg3[%c0_3, %c0_4], %3 {strides = array<i32>} : memref<2x256xf32, #tpu.memory_space<vmem>>, vector<2x256xf32>,
    %5 = vector.extract_strided_slice %2 {offsets = [0, 256], sizes = [2, 128], strides = [1, 1]} : vector<2x384xf32> to vector<2x128xf32>
    %c0_5 = arith.constant 0 : index
    %c0_6 = arith.constant 0 : index
    %6 = vector.load %arg4[%c0_5, %c0_6] : memref<2x128xf32, #tpu.memory_space<vmem>>, vector<2x128xf32>
    tpu.vector_store %arg4[%c0_5, %c0_6], %5 {strides = array<i32>} : memref<2x128xf32, #tpu.memory_space<vmem>>, vector<2x128xf32>,
    return
  }
  func.func @transform_0(%arg0: i32) -> (i32, i32) {
    %c0_i32 = arith.constant 0 : i32
    %c0_i32_0 = arith.constant 0 : i32
    return %arg0, %c0_i32 : i32, i32
  }
  func.func @transform_1(%arg0: i32) -> (i32, i32) {
    %c0_i32 = arith.constant 0 : i32
    %c0_i32_0 = arith.constant 0 : i32
    %c0_i32_1 = arith.constant 0 : i32
    return %c0_i32, %c0_i32_0 : i32, i32
  }
  func.func @transform_2(%arg0: i32) -> (i32, i32) {
    %c0_i32 = arith.constant 0 : i32
    %c0_i32_0 = arith.constant 0 : i32
    return %arg0, %c0_i32 : i32, i32
  }
  func.func @transform_3(%arg0: i32) -> (i32, i32) {
    %c0_i32 = arith.constant 0 : i32
    %c0_i32_0 = arith.constant 0 : i32
    return %arg0, %c0_i32 : i32, i32
  }
}

</mosaic_0001>

<llo_original>
// kernel: tpu_custom_call.1
$region0: #{tpu_custom_call.1}
  #allocation0 [shape = 'u32[]', space=smem, size = 0x4, offset = 0x4, fixed_abs, tag = 'smem constant byte address 0x4 - core index']
  #allocation1 [shape = 'u32[144,128]{1,0:T(1,128)}', space=vmem, size = 0x12000, scoped, tag = 'internal scratch']
  %s0 = inlined_call_operand.hbm [shape: f32[2,256], index: 0, kind: input, shape index: {}]
  %s1 = inlined_call_operand.hbm [shape: f32[256,384], index: 1, kind: input, shape index: {}]
  %s2 = inlined_call_operand.hbm [shape: f32[2,256], index: 2, kind: output, shape index: {0}]
  %s3 = inlined_call_operand.hbm [shape: f32[2,128], index: 3, kind: output, shape index: {1}]
  %4 = xla_tuple %s2, %s3
  %s5 = sld [smem:[#allocation0]]
  $region34: #{tpu_custom_call.1} parent=0
    _
  %s7 = ssub.s32 1, %s5
  %s8 = scalar_select 0, %s7, %s5
  $region1: #{tpu_custom_call.1} parent=0
    #allocation2 [shape = 'u8[2048]{0}', space=vmem, size = 0x800, scoped, tag = 'input window, operand 0, single buffered']
    #allocation3 [shape = 's32[1]{0}', space=sflag, size = 0x4, scoped, tag = 'scoped memory for tpu_custom_call.1']
    #allocation4 [shape = 's32[1]{0}', space=sflag, size = 0x4, scoped, tag = 'scoped memory for tpu_custom_call.1']
    #allocation5 [shape = 'u8[393216]{0}', space=vmem, size = 0x60000, scoped, tag = 'input window, operand 1, single buffered']
    #allocation6 [shape = 's32[1]{0}', space=sflag, size = 0x4, scoped, tag = 'scoped memory for tpu_custom_call.1']
    #allocation7 [shape = 'u8[2048]{0}', space=vmem, size = 0x800, scoped, tag = 'output window, operand 0, single buffered']
    #allocation8 [shape = 'u8[1024]{0}', space=vmem, size = 0x400, scoped, tag = 'output window, operand 1, single buffered']
    #allocation9 [shape = 's32[1]{0}', space=sflag, size = 0x4, scoped, tag = 'scoped memory for tpu_custom_call.1']
    %9 = vsyncpa [#allocation3], 0
    %10 = vsyncpa [#allocation6], 0
    %11 = vsyncpa [#allocation4], 0
    %12 = vsyncpa [#allocation9], 0
    // Predicated region
    $region2: #{tpu_custom_call.1} parent=1 // pred_check
      _
    $region3: #{tpu_custom_call.1} parent=1 // pred_check_branch
      %14 = sbr.rel (0) target = $region5
    $region4: #{tpu_custom_call.1} parent=1 // pred_region
      %s16 = ssub.s32 64, 64
      %17 = vsyncadd [#allocation3], %s16
      %s19 = sshll.u32 [#allocation2], 4
      %s20 = int_to_ptr.vmem [resolvable:$true] %s19
      %22 = dma.hbm_to_vmem [thread:$0]  %s0, 64, %s20, [#allocation3]
    $region5: #{tpu_custom_call.1} parent=1 // pred_fallthru
      _
    // Predicated region
    $region6: #{tpu_custom_call.1} parent=1 // pred_check
      _
    $region7: #{tpu_custom_call.1} parent=1 // pred_check_branch
      %24 = sbr.rel (0) target = $region9
    $region8: #{tpu_custom_call.1} parent=1 // pred_region
      %s26 = ssub.s32 12288, 12288
      %27 = vsyncadd [#allocation6], %s26
      %s28 = sshll.u32 [#allocation5], 4
      %s29 = int_to_ptr.vmem [resolvable:$true] %s28
      %34 = dma.hbm_to_vmem [thread:$0]  %s1, 12288, %s29, [#allocation6], 384, 384, 24
    $region9: #{tpu_custom_call.1} parent=1 // pred_fallthru
      _
    // Predicated region
    $region10: #{tpu_custom_call.1} parent=1 // pred_check
      _
    $region11: #{tpu_custom_call.1} parent=1 // pred_check_branch
      %36 = sbr.rel (0) target = $region13
    $region12: #{tpu_custom_call.1} parent=1 // pred_region
      %37 = dma.done [#allocation3], 64
    $region13: #{tpu_custom_call.1} parent=1 // pred_fallthru
      _
    // Predicated region
    $region14: #{tpu_custom_call.1} parent=1 // pred_check
      _
    $region15: #{tpu_custom_call.1} parent=1 // pred_check_branch
      %39 = sbr.rel (0) target = $region17
    $region16: #{tpu_custom_call.1} parent=1 // pred_region
      %40 = dma.done [#allocation6], 12288
    $region17: #{tpu_custom_call.1} parent=1 // pred_fallthru
      _
    %v41 = vld [vmem:[#allocation2] sm:$0xf]
    %v42 = vld [vmem:[#allocation5] sm:$0xff]
    %v43 = vld [vmem:[#allocation5 + $0x8] sm:$0xff]
    %v44 = vld [vmem:[#allocation5 + $0x10] sm:$0xff]
    %v45 = vld [vmem:[#allocation5 + $0x18] sm:$0xff]
    %v46 = vld [vmem:[#allocation5 + $0x20] sm:$0xff]
    %v47 = vld [vmem:[#allocation5 + $0x28] sm:$0xff]
    %v48 = vld [vmem:[#allocation5 + $0x30] sm:$0xff]
    %v49 = vld [vmem:[#allocation5 + $0x38] sm:$0xff]
    %v50 = vld [vmem:[#allocation5 + $0x40] sm:$0xff]
    %v51 = vld [vmem:[#allocation5 + $0x48] sm:$0xff]
    %v52 = vld [vmem:[#allocation5 + $0x50] sm:$0xff]
    %v53 = vld [vmem:[#allocation5 + $0x58] sm:$0xff]
    %v54 = vld [vmem:[#allocation5 + $0x60] sm:$0xff]
    %v55 = vld [vmem:[#allocation5 + $0x68] sm:$0xff]
    %v56 = vld [vmem:[#allocation5 + $0x70] sm:$0xff]
    %v57 = vld [vmem:[#allocation5 + $0x78] sm:$0xff]
    %v58 = vld [vmem:[#allocation5 + $0x80] sm:$0xff]
    %v59 = vld [vmem:[#allocation5 + $0x88] sm:$0xff]
    %v60 = vld [vmem:[#allocation5 + $0x90] sm:$0xff]
    %v61 = vld [vmem:[#allocation5 + $0x98] sm:$0xff]
    %v62 = vld [vmem:[#allocation5 + $0xa0] sm:$0xff]
    %v63 = vld [vmem:[#allocation5 + $0xa8] sm:$0xff]
    %v64 = vld [vmem:[#allocation5 + $0xb0] sm:$0xff]
    %v65 = vld [vmem:[#allocation5 + $0xb8] sm:$0xff]
    %v66 = vld [vmem:[#allocation5 + $0xc0] sm:$0xff]
    %v67 = vld [vmem:[#allocation5 + $0xc8] sm:$0xff]
    %v68 = vld [vmem:[#allocation5 + $0xd0] sm:$0xff]
    %v69 = vld [vmem:[#allocation5 + $0xd8] sm:$0xff]
    %v70 = vld [vmem:[#allocation5 + $0xe0] sm:$0xff]
    %v71 = vld [vmem:[#allocation5 + $0xe8] sm:$0xff]
    %v72 = vld [vmem:[#allocation5 + $0xf0] sm:$0xff]
    %v73 = vld [vmem:[#allocation5 + $0xf8] sm:$0xff]
    %v74 = vld [vmem:[#allocation5 + $0x100] sm:$0xff]
    %v75 = vld [vmem:[#allocation5 + $0x108] sm:$0xff]
    %v76 = vld [vmem:[#allocation5 + $0x110] sm:$0xff]
    %v77 = vld [vmem:[#allocation5 + $0x118] sm:$0xff]
    %v78 = vld [vmem:[#allocation5 + $0x120] sm:$0xff]
    %v79 = vld [vmem:[#allocation5 + $0x128] sm:$0xff]
    %v80 = vld [vmem:[#allocation5 + $0x130] sm:$0xff]
    %v81 = vld [vmem:[#allocation5 + $0x138] sm:$0xff]
    %v82 = vld [vmem:[#allocation5 + $0x140] sm:$0xff]
    %v83 = vld [vmem:[#allocation5 + $0x148] sm:$0xff]
    %v84 = vld [vmem:[#allocation5 + $0x150] sm:$0xff]
    %v85 = vld [vmem:[#allocation5 + $0x158] sm:$0xff]
    %v86 = vld [vmem:[#allocation5 + $0x160] sm:$0xff]
    %v87 = vld [vmem:[#allocation5 + $0x168] sm:$0xff]
    %v88 = vld [vmem:[#allocation5 + $0x170] sm:$0xff]
    %v89 = vld [vmem:[#allocation5 + $0x178] sm:$0xff]
    %v90 = vld [vmem:[#allocation5 + $0x180] sm:$0xff]
    %v91 = vld [vmem:[#allocation5 + $0x188] sm:$0xff]
    %v92 = vld [vmem:[#allocation5 + $0x190] sm:$0xff]
    %v93 = vld [vmem:[#allocation5 + $0x198] sm:$0xff]
    %v94 = vld [vmem:[#allocation5 + $0x1a0] sm:$0xff]
    %v95 = vld [vmem:[#allocation5 + $0x1a8] sm:$0xff]
    %v96 = vld [vmem:[#allocation5 + $0x1b0] sm:$0xff]
    %v97 = vld [vmem:[#allocation5 + $0x1b8] sm:$0xff]
    %v98 = vld [vmem:[#allocation5 + $0x1c0] sm:$0xff]
    %v99 = vld [vmem:[#allocation5 + $0x1c8] sm:$0xff]
    %v100 = vld [vmem:[#allocation5 + $0x1d0] sm:$0xff]
    %v101 = vld [vmem:[#allocation5 + $0x1d8] sm:$0xff]
    %v102 = vld [vmem:[#allocation5 + $0x1e0] sm:$0xff]
    %v103 = vld [vmem:[#allocation5 + $0x1e8] sm:$0xff]
    %v104 = vld [vmem:[#allocation5 + $0x1f0] sm:$0xff]
    %v105 = vld [vmem:[#allocation5 + $0x1f8] sm:$0xff]
    %v106 = vld [vmem:[#allocation5 + $0x200] sm:$0xff]
    %v107 = vld [vmem:[#allocation5 + $0x208] sm:$0xff]
    %v108 = vld [vmem:[#allocation5 + $0x210] sm:$0xff]
    %v109 = vld [vmem:[#allocation5 + $0x218] sm:$0xff]
    %v110 = vld [vmem:[#allocation5 + $0x220] sm:$0xff]
    %v111 = vld [vmem:[#allocation5 + $0x228] sm:$0xff]
    %v112 = vld [vmem:[#allocation5 + $0x230] sm:$0xff]
    %v113 = vld [vmem:[#allocation5 + $0x238] sm:$0xff]
    %v114 = vld [vmem:[#allocation5 + $0x240] sm:$0xff]
    %v115 = vld [vmem:[#allocation5 + $0x248] sm:$0xff]
    %v116 = vld [vmem:[#allocation5 + $0x250] sm:$0xff]
    %v117 = vld [vmem:[#allocation5 + $0x258] sm:$0xff]
    %v118 = vld [vmem:[#allocation5 + $0x260] sm:$0xff]
    %v119 = vld [vmem:[#allocation5 + $0x268] sm:$0xff]
    %v120 = vld [vmem:[#allocation5 + $0x270] sm:$0xff]
    %v121 = vld [vmem:[#allocation5 + $0x278] sm:$0xff]
    %v122 = vld [vmem:[#allocation5 + $0x280] sm:$0xff]
    %v123 = vld [vmem:[#allocation5 + $0x288] sm:$0xff]
    %v124 = vld [vmem:[#allocation5 + $0x290] sm:$0xff]
    %v125 = vld [vmem:[#allocation5 + $0x298] sm:$0xff]
    %v126 = vld [vmem:[#allocation5 + $0x2a0] sm:$0xff]
    %v127 = vld [vmem:[#allocation5 + $0x2a8] sm:$0xff]
    %v128 = vld [vmem:[#allocation5 + $0x2b0] sm:$0xff]
    %v129 = vld [vmem:[#allocation5 + $0x2b8] sm:$0xff]
    %v130 = vld [vmem:[#allocation5 + $0x2c0] sm:$0xff]
    %v131 = vld [vmem:[#allocation5 + $0x2c8] sm:$0xff]
    %v132 = vld [vmem:[#allocation5 + $0x2d0] sm:$0xff]
    %v133 = vld [vmem:[#allocation5 + $0x2d8] sm:$0xff]
    %v134 = vld [vmem:[#allocation5 + $0x2e0] sm:$0xff]
    %v135 = vld [vmem:[#allocation5 + $0x2e8] sm:$0xff]
    %v136 = vld [vmem:[#allocation5 + $0x2f0] sm:$0xff]
    %v137 = vld [vmem:[#allocation5 + $0x2f8] sm:$0xff]
    %v140 = vunpack.c.l.s4 1983009808
    %v141 = vunpack.c.0.s8 %v140
    %v142 = vlaneseq
    %v143 = vshrl.u32 %v142, 7
    %v144 = vsub.s32 %v141, %v143
    %v145 = vrot.slane %v41, %v144
    %v146 = vcombine.high %v145, %v145
    %149 = vmatprep.subr.mxu0 %v43
    %150 = vmatpush1.msra.mxu0 %v42
    %151 = vmatprep.subr.mxu0 %v46
    %152 = vmatpush1.msra.mxu0 %v45
    %153 = vmatprep.subr.mxu0 %v49
    %154 = vmatpush1.msra.mxu0 %v48
    %155 = vmatprep.subr.mxu0 %v52
    %156 = vmatpush1.msra.mxu0 %v51
    %157 = vmatprep.subr.mxu0 %v55
    %158 = vmatpush1.msra.mxu0 %v54
    %159 = vmatprep.subr.mxu0 %v58
    %160 = vmatpush1.msra.mxu0 %v57
    %161 = vmatprep.subr.mxu0 %v61
    %162 = vmatpush1.msra.mxu0 %v60
    %163 = vmatprep.subr.mxu0 %v64
    %164 = vmatpush1.msra.mxu0 %v63
    %165 = vmatprep.subr.mxu0 %v67
    %166 = vmatpush1.msra.mxu0 %v66
    %167 = vmatprep.subr.mxu0 %v70
    %168 = vmatpush1.msra.mxu0 %v69
    %169 = vmatprep.subr.mxu0 %v73
    %170 = vmatpush1.msra.mxu0 %v72
    %171 = vmatprep.subr.mxu0 %v76
    %172 = vmatpush1.msra.mxu0 %v75
    %173 = vmatprep.subr.mxu0 %v79
    %174 = vmatpush1.msra.mxu0 %v78
    %175 = vmatprep.subr.mxu0 %v82
    %176 = vmatpush1.msra.mxu0 %v81
    %177 = vmatprep.subr.mxu0 %v85
    %178 = vmatpush1.msra.mxu0 %v84
    %179 = vmatprep.subr.mxu0 %v88
    %180 = vmatpush1.msra.mxu0 %v87
    %181 = vmatprep.subr.mxu0 %v91
    %182 = vmatpush1.msra.mxu0 %v90
    %183 = vmatprep.subr.mxu0 %v94
    %184 = vmatpush1.msra.mxu0 %v93
    %185 = vmatprep.subr.mxu0 %v97
    %186 = vmatpush1.msra.mxu0 %v96
    %187 = vmatprep.subr.mxu0 %v100
    %188 = vmatpush1.msra.mxu0 %v99
    %189 = vmatprep.subr.mxu0 %v103
    %190 = vmatpush1.msra.mxu0 %v102
    %191 = vmatprep.subr.mxu0 %v106
    %192 = vmatpush1.msra.mxu0 %v105
    %193 = vmatprep.subr.mxu0 %v109
    %194 = vmatpush1.msra.mxu0 %v108
    %195 = vmatprep.subr.mxu0 %v112
    %196 = vmatpush1.msra.mxu0 %v111
    %197 = vmatprep.subr.mxu0 %v115
    %198 = vmatpush1.msra.mxu0 %v114
    %199 = vmatprep.subr.mxu0 %v118
    %200 = vmatpush1.msra.mxu0 %v117
    %201 = vmatprep.subr.mxu0 %v121
    %202 = vmatpush1.msra.mxu0 %v120
    %203 = vmatprep.subr.mxu0 %v124
    %204 = vmatpush1.msra.mxu0 %v123
    %205 = vmatprep.subr.mxu0 %v127
    %206 = vmatpush1.msra.mxu0 %v126
    %207 = vmatprep.subr.mxu0 %v130
    %208 = vmatpush1.msra.mxu0 %v129
    %209 = vmatprep.subr.mxu0 %v133
    %210 = vmatpush1.msra.mxu0 %v132
    %211 = vmatprep.subr.mxu0 %v136
    %212 = vmatpush1.msra.mxu0 %v135
    %213 = vmatprep.mubr.f32.mxu0 %v146
    %214 = vmatmul.mubr.f32.gmra.mrb[0].mxu0 %v145
    %v215 = vpop.f32.mrb[0].mxu0
    %v216 = vadd.f32 0.0, %v215
    %v217 = vpop.f32.mrb[0].mxu0
    %v218 = vadd.f32 0.0, %v217
    %219 = vdwg.mxu0
    %220 = vmatprep.subr.mxu0 0.0
    %221 = vmatpush1.msra.mxu0 %v44
    %222 = vmatprep.subr.mxu0 0.0
    %223 = vmatpush1.msra.mxu0 %v47
    %224 = vmatprep.subr.mxu0 0.0
    %225 = vmatpush1.msra.mxu0 %v50
    %226 = vmatprep.subr.mxu0 0.0
    %227 = vmatpush1.msra.mxu0 %v53
    %228 = vmatprep.subr.mxu0 0.0
    %229 = vmatpush1.msra.mxu0 %v56
    %230 = vmatprep.subr.mxu0 0.0
    %231 = vmatpush1.msra.mxu0 %v59
    %232 = vmatprep.subr.mxu0 0.0
    %233 = vmatpush1.msra.mxu0 %v62
    %234 = vmatprep.subr.mxu0 0.0
    %235 = vmatpush1.msra.mxu0 %v65
    %236 = vmatprep.subr.mxu0 0.0
    %237 = vmatpush1.msra.mxu0 %v68
    %238 = vmatprep.subr.mxu0 0.0
    %239 = vmatpush1.msra.mxu0 %v71
    %240 = vmatprep.subr.mxu0 0.0
    %241 = vmatpush1.msra.mxu0 %v74
    %242 = vmatprep.subr.mxu0 0.0
    %243 = vmatpush1.msra.mxu0 %v77
    %244 = vmatprep.subr.mxu0 0.0
    %245 = vmatpush1.msra.mxu0 %v80
    %246 = vmatprep.subr.mxu0 0.0
    %247 = vmatpush1.msra.mxu0 %v83
    %248 = vmatprep.subr.mxu0 0.0
    %249 = vmatpush1.msra.mxu0 %v86
    %250 = vmatprep.subr.mxu0 0.0
    %251 = vmatpush1.msra.mxu0 %v89
    %252 = vmatprep.subr.mxu0 0.0
    %253 = vmatpush1.msra.mxu0 %v92
    %254 = vmatprep.subr.mxu0 0.0
    %255 = vmatpush1.msra.mxu0 %v95
    %256 = vmatprep.subr.mxu0 0.0
    %257 = vmatpush1.msra.mxu0 %v98
    %258 = vmatprep.subr.mxu0 0.0
    %259 = vmatpush1.msra.mxu0 %v101
    %260 = vmatprep.subr.mxu0 0.0
    %261 = vmatpush1.msra.mxu0 %v104
    %262 = vmatprep.subr.mxu0 0.0
    %263 = vmatpush1.msra.mxu0 %v107
    %264 = vmatprep.subr.mxu0 0.0
    %265 = vmatpush1.msra.mxu0 %v110
    %266 = vmatprep.subr.mxu0 0.0
    %267 = vmatpush1.msra.mxu0 %v113
    %268 = vmatprep.subr.mxu0 0.0
    %269 = vmatpush1.msra.mxu0 %v116
    %270 = vmatprep.subr.mxu0 0.0
    %271 = vmatpush1.msra.mxu0 %v119
    %272 = vmatprep.subr.mxu0 0.0
    %273 = vmatpush1.msra.mxu0 %v122
    %274 = vmatprep.subr.mxu0 0.0
    %275 = vmatpush1.msra.mxu0 %v125
    %276 = vmatprep.subr.mxu0 0.0
    %277 = vmatpush1.msra.mxu0 %v128
    %278 = vmatprep.subr.mxu0 0.0
    %279 = vmatpush1.msra.mxu0 %v131
    %280 = vmatprep.subr.mxu0 0.0
    %281 = vmatpush1.msra.mxu0 %v134
    %282 = vmatprep.subr.mxu0 0.0
    %283 = vmatpush1.msra.mxu0 %v137
    %284 = vmatprep.mubr.f32.mxu0 %v146
    %285 = vmatmul.mubr.f32.gmra.mrb[0].mxu0 %v145
    %v286 = vpop.f32.mrb[0].mxu0
    %v287 = vadd.f32 0.0, %v286
    %v288 = vpop.f32.mrb[0].mxu0
    %289 = vdwg.mxu0
    %v292 = vcombine.low %v216, %v218
    %v294 = vunpack.c.l.s4 1983009808
    %v295 = vunpack.c.0.s8 %v294
    %v296 = vlaneseq
    %v297 = vshrl.u32 %v296, 7
    %v298 = vsub.s32 %v295, %v297
    %v299 = vrot.slane %v292, %v298
    %301 = vst [vmem:[#allocation7] sm:$0xf] %v299
    %302 = vst [vmem:[#allocation8] sm:$0x3] %v287
    // Predicated region
    $region18: #{tpu_custom_call.1} parent=1 // pred_check
      _
    $region19: #{tpu_custom_call.1} parent=1 // pred_check_branch
      %304 = sbr.rel (0) target = $region21
    $region20: #{tpu_custom_call.1} parent=1 // pred_region
      %s306 = ssub.s32 64, 64
      %307 = vsyncadd [#allocation4], %s306
      %s309 = sshll.u32 [#allocation7], 4
      %s310 = int_to_ptr.vmem [resolvable:$true] %s309
      %312 = dma.vmem_to_hbm [thread:$0]  %s310, 64, %s2, [#allocation4]
    $region21: #{tpu_custom_call.1} parent=1 // pred_fallthru
      _
    // Predicated region
    $region22: #{tpu_custom_call.1} parent=1 // pred_check
      _
    $region23: #{tpu_custom_call.1} parent=1 // pred_check_branch
      %314 = sbr.rel (0) target = $region25
    $region24: #{tpu_custom_call.1} parent=1 // pred_region
      %s316 = ssub.s32 32, 32
      %317 = vsyncadd [#allocation9], %s316
      %s319 = sshll.u32 [#allocation8], 4
      %s320 = int_to_ptr.vmem [resolvable:$true] %s319
      %322 = dma.vmem_to_hbm [thread:$0]  %s320, 32, %s3, [#allocation9]
    $region25: #{tpu_custom_call.1} parent=1 // pred_fallthru
      _
    // Predicated region
    $region26: #{tpu_custom_call.1} parent=1 // pred_check
      _
    $region27: #{tpu_custom_call.1} parent=1 // pred_check_branch
      %324 = sbr.rel (0) target = $region29
    $region28: #{tpu_custom_call.1} parent=1 // pred_region
      %325 = dma.done [#allocation4], 64
    $region29: #{tpu_custom_call.1} parent=1 // pred_fallthru
      _
    // Predicated region
    $region30: #{tpu_custom_call.1} parent=1 // pred_check
      _
    $region31: #{tpu_custom_call.1} parent=1 // pred_check_branch
      %327 = sbr.rel (0) target = $region33
    $region32: #{tpu_custom_call.1} parent=1 // pred_region
      %328 = dma.done [#allocation9], 32
    $region33: #{tpu_custom_call.1} parent=1 // pred_fallthru
      _
    %329 = vsyncpa [#allocation3], 1
    %330 = vsyncpa [#allocation6], 1
    %331 = vsyncpa [#allocation4], 1
    %332 = vsyncpa [#allocation9], 1

</llo_original>
